<compile_context>
chip_gen: v5e
topology: v5e:2x2
jax: 0.10.0
libtpu: 0.0.40
codegen_flags: <defaults>
</compile_context>

<pallas_src>
import functools

import jax
import jax.numpy as jnp
from jax.experimental import pallas as pl
from jax.experimental.pallas import tpu as pltpu

# ----------------------------- config ---------------------------------------
PATCH = 14
IMG = 28                       # 2x2 patches
EMBED_DIM = 384                # "small" backbone embedding
NUM_HEADS = 6
HEAD_DIM = EMBED_DIM // NUM_HEADS
DEPTH = 2
MLP_HIDDEN = 4 * EMBED_DIM
HEAD_HIDDEN = 256
OUT_DIM = 11
LN_EPS = 1e-6                  # DINOv2 LayerNorm eps


# --------------------------- in-kernel helpers -------------------------------
def _ln(x, g, b):
    """LayerNorm over last dim, float32 math."""
    mean = jnp.mean(x, axis=-1, keepdims=True)
    var = jnp.mean((x - mean) * (x - mean), axis=-1, keepdims=True)
    return (x - mean) * jax.lax.rsqrt(var + LN_EPS) * g + b


# ------------------ kernel 1: patch embed + CLS + pos + pad ------------------
def _embed_kernel(p_ref, w_ref, b_ref, cls_ref, pos_ref, o_ref,
                  *, batch, n_patch, seq_pad):
    patches = p_ref[...].astype(jnp.bfloat16)                       # (B*P, 588)
    emb = jnp.dot(patches, w_ref[...],
                  preferred_element_type=jnp.float32) + b_ref[...]  # (B*P, D)
    cls_row = cls_ref[...] + pos_ref[0:1, :]                        # (1, D)
    pos_tok = pos_ref[1:, :]                                        # (P, D)
    pad = seq_pad - (n_patch + 1)
    rows = []
    for b in range(batch):                                          # static unroll
        rows.append(cls_row)
        rows.append(emb[b * n_patch:(b + 1) * n_patch, :] + pos_tok)
        if pad:
            rows.append(jnp.zeros((pad, EMBED_DIM), jnp.float32))   # pad tokens
    o_ref[...] = jnp.concatenate(rows, axis=0)                      # one dense store


def embed_tokens(patches, w, b2d, cls2d, pos2d, *, batch, n_patch, seq_pad):
    """patches: (B*P, 588) -> padded tokens (B*seq_pad, D) with CLS + pos embed."""
    BP, K = patches.shape
    D = EMBED_DIM
    T = n_patch + 1
    return pl.pallas_call(
        functools.partial(_embed_kernel, batch=batch, n_patch=n_patch,
                          seq_pad=seq_pad),
        out_shape=jax.ShapeDtypeStruct((batch * seq_pad, D), jnp.float32),
        grid=(1,),
        in_specs=[
            pl.BlockSpec((BP, K), lambda i: (0, 0)),
            pl.BlockSpec((K, D), lambda i: (0, 0)),
            pl.BlockSpec((1, D), lambda i: (0, 0)),
            pl.BlockSpec((1, D), lambda i: (0, 0)),
            pl.BlockSpec((T, D), lambda i: (0, 0)),
        ],
        out_specs=pl.BlockSpec((batch * seq_pad, D), lambda i: (0, 0)),
    )(patches, w, b2d, cls2d, pos2d)


# ----- kernel 2: fused backbone (depth-grid blocks + final LN + labels head) -
def _backbone_kernel(x_ref,
                     ln1g_ref, ln1b_ref, qkvw_ref, qkvb_ref,
                     projw_ref, projb_ref, ln2g_ref, ln2b_ref,
                     fc1w_ref, fc1b_ref, fc2w_ref, fc2b_ref,
                     fing_ref, finb_ref, hw1_ref, hb1_ref, hw2_ref, hb2_ref,
                     o_ref, x_scr, *, batch, seq_pad, seq_real):
    D = EMBED_DIM
    Dh = HEAD_DIM
    d = pl.program_id(0)

    @pl.when(d == 0)
    def _():
        x_scr[...] = x_ref[...]            # load activations into VMEM once

    x = x_scr[...]                         # (B*Tp, D) f32, VMEM-resident

    # --- attention sub-block ---
    h = _ln(x, ln1g_ref[0], ln1b_ref[0])
    qkv = jnp.dot(h.astype(jnp.bfloat16), qkvw_ref[0],
                  preferred_element_type=jnp.float32) + qkvb_ref[0]  # (B*Tp, 3D)

    scale = 1.0 / (Dh ** 0.5)
    col = jax.lax.broadcasted_iota(jnp.int32, (seq_pad, seq_pad), 1)
    kmask = col < seq_real                 # pad tokens masked out as keys

    out_rows = []
    for b in range(batch):                 # static unroll, sublane-aligned rows
        r0 = b * seq_pad
        q_all = (qkv[r0:r0 + seq_pad, 0:D] * scale).astype(jnp.bfloat16)
        k_all = qkv[r0:r0 + seq_pad, D:2 * D].astype(jnp.bfloat16)
        v_all = qkv[r0:r0 + seq_pad, 2 * D:3 * D].astype(jnp.bfloat16)
        head_outs = []
        for hp in range(NUM_HEADS // 2):   # 128-lane-aligned head pairs
            c = hp * 2 * Dh
            q2 = q_all[:, c:c + 2 * Dh]
            k2 = k_all[:, c:c + 2 * Dh]
            v2 = v_all[:, c:c + 2 * Dh]
            for hh in range(2):            # split pair inside registers
                lo = hh * Dh
                q = q2[:, lo:lo + Dh]
                k = k2[:, lo:lo + Dh]
                v = v2[:, lo:lo + Dh]
                s = jnp.dot(q, k.T, preferred_element_type=jnp.float32)  # (Tp,Tp)
                s = jnp.where(kmask, s, -1e30)
                s = s - jnp.max(s, axis=-1, keepdims=True)
                p = jnp.exp(s)
                p = p * pl.reciprocal(jnp.sum(p, axis=-1, keepdims=True),
                                      approx=True)
                head_outs.append(jnp.dot(p.astype(jnp.bfloat16), v,
                                         preferred_element_type=jnp.float32))
        out_rows.append(jnp.concatenate(head_outs, axis=-1))   # (Tp, D) lane-dense
    attn_out = jnp.concatenate(out_rows, axis=0)               # (B*Tp, D)

    x = x + jnp.dot(attn_out.astype(jnp.bfloat16), projw_ref[0],
                    preferred_element_type=jnp.float32) + projb_ref[0]

    # --- MLP sub-block ---
    h2 = _ln(x, ln2g_ref[0], ln2b_ref[0])
    m = jnp.dot(h2.astype(jnp.bfloat16), fc1w_ref[0],
                preferred_element_type=jnp.float32) + fc1b_ref[0]
    # TODO(synk): DINOv2 uses exact (erf) GELU; tanh approximation used here.
    m = jax.nn.gelu(m, approximate=True)
    x = x + jnp.dot(m.astype(jnp.bfloat16), fc2w_ref[0],
                    preferred_element_type=jnp.float32) + fc2b_ref[0]

    x_scr[...] = x                         # carry activations to next depth step

    @pl.when(d == pl.num_programs(0) - 1)
    def _():
        # CLS rows live at sublane-aligned offsets b*seq_pad (seq_pad % 8 == 0).
        cls = jnp.concatenate(
            [x[b * seq_pad:b * seq_pad + 1, :] for b in range(batch)], axis=0)
        y = _ln(cls, fing_ref[...], finb_ref[...])
        hid = jnp.dot(y.astype(jnp.bfloat16), hw1_ref[...],
                      preferred_element_type=jnp.float32) + hb1_ref[...]
        hid = jnp.maximum(hid, 0.0)                               # ReLU
        logits = jnp.dot(hid.astype(jnp.bfloat16), hw2_ref[...],
                         preferred_element_type=jnp.float32) + hb2_ref[...]
        o_ref[...] = logits.astype(o_ref.dtype)


def backbone_forward(x, params, *, batch, seq_pad, seq_real):
    """Padded tokens (B*seq_pad, D) -> logits (B, OUT_DIM) in one pallas_call."""
    D = EMBED_DIM
    H3 = 3 * D
    MH = MLP_HIDDEN
    HH = HEAD_HIDDEN
    BT = batch * seq_pad
    stk = params["blocks"]

    flops = (DEPTH * (2 * BT * D * H3 + 2 * BT * D * D + 2 * BT * D * MH
                      + 2 * BT * MH * D
                      + batch * NUM_HEADS * 2 * (2 * seq_pad * seq_pad * HEAD_DIM))
             + 2 * batch * D * HH + 2 * batch * HH * OUT_DIM)
    bytes_w = (DEPTH * 2 * (D * H3 + D * D + 2 * D * MH)
               + 2 * (D * HH + HH * OUT_DIM))
    bytes_accessed = bytes_w + BT * D * 4 + batch * OUT_DIM * 4
    transcend = DEPTH * (batch * NUM_HEADS * seq_pad * seq_pad + BT * MH)

    const = lambda d: (0, 0)
    per_depth = lambda d: (d, 0, 0)

    grid_spec = pltpu.PrefetchScalarGridSpec(
        num_scalar_prefetch=0,
        grid=(DEPTH,),
        in_specs=[
            pl.BlockSpec((BT, D), const),              # x (loaded once)
            pl.BlockSpec((1, 1, D), per_depth),        # ln1_g
            pl.BlockSpec((1, 1, D), per_depth),        # ln1_b
            pl.BlockSpec((1, D, H3), per_depth),       # qkv_w (bf16, streamed)
            pl.BlockSpec((1, 1, H3), per_depth),       # qkv_b
            pl.BlockSpec((1, D, D), per_depth),        # proj_w (bf16, streamed)
            pl.BlockSpec((1, 1, D), per_depth),        # proj_b
            pl.BlockSpec((1, 1, D), per_depth),        # ln2_g
            pl.BlockSpec((1, 1, D), per_depth),        # ln2_b
            pl.BlockSpec((1, D, MH), per_depth),       # fc1_w (bf16, streamed)
            pl.BlockSpec((1, 1, MH), per_depth),       # fc1_b
            pl.BlockSpec((1, MH, D), per_depth),       # fc2_w (bf16, streamed)
            pl.BlockSpec((1, 1, D), per_depth),        # fc2_b
            pl.BlockSpec((1, D), const),               # final ln_g
            pl.BlockSpec((1, D), const),               # final ln_b
            pl.BlockSpec((D, HH), const),              # head_w1 (bf16)
            pl.BlockSpec((1, HH), const),              # head_b1
            pl.BlockSpec((HH, OUT_DIM), const),        # head_w2 (bf16)
            pl.BlockSpec((1, OUT_DIM), const),         # head_b2
        ],
        out_specs=pl.BlockSpec((batch, OUT_DIM), const),
        scratch_shapes=[pltpu.VMEM((BT, D), jnp.float32)],   # resident activations
    )
    return pl.pallas_call(
        functools.partial(_backbone_kernel, batch=batch, seq_pad=seq_pad,
                          seq_real=seq_real),
        out_shape=jax.ShapeDtypeStruct((batch, OUT_DIM), jnp.float32),
        grid_spec=grid_spec,
        compiler_params=pltpu.CompilerParams(
            dimension_semantics=("arbitrary",),        # depth carries activations
            vmem_limit_bytes=32 * 1024 * 1024),
        cost_estimate=pl.CostEstimate(flops=flops, transcendentals=transcend,
                                      bytes_accessed=bytes_accessed),
    )(x,
      stk["ln1_g"], stk["ln1_b"], stk["qkv_w"], stk["qkv_b"],
      stk["proj_w"], stk["proj_b"], stk["ln2_g"], stk["ln2_b"],
      stk["fc1_w"], stk["fc1_b"], stk["fc2_w"], stk["fc2_b"],
      params["ln_g"], params["ln_b"],
      params["head_w1"], params["head_b1"],
      params["head_w2"], params["head_b2"])


# ----------------------------- glue / model ---------------------------------
def extract_patches(x):
    """NCHW [B,C,H,W] -> [B, num_patches, C*PATCH*PATCH] (matches Conv2d k=s=14)."""
    B, C, H, W = x.shape
    hp, wp = H // PATCH, W // PATCH
    x = x.reshape(B, C, hp, PATCH, wp, PATCH)
    x = x.transpose(0, 2, 4, 1, 3, 5)          # (B, hp, wp, C, ph, pw)
    return x.reshape(B, hp * wp, C * PATCH * PATCH)


def init_params(key):
    # Matmul weights in bf16 (MXU-native on v5e/v6e/v7x, halves weight DMA);
    # LN params / biases / cls / pos in f32. Per-block weights stacked on depth.
    def nrm(k, shape, std=0.02, dtype=jnp.float32):
        return (std * jax.random.normal(k, shape)).astype(dtype)

    BF = jnp.bfloat16
    D, H3, MH = EMBED_DIM, 3 * EMBED_DIM, MLP_HIDDEN
    keys = iter(jax.random.split(key, 16))
    num_patches = (IMG // PATCH) ** 2
    T = num_patches + 1
    return {
        "patch_w": nrm(next(keys), (3 * PATCH * PATCH, D), dtype=BF),
        "patch_b": jnp.zeros((1, D), jnp.float32),
        "cls": nrm(next(keys), (1, D)),
        "pos": nrm(next(keys), (T, D)),
        "ln_g": jnp.ones((1, D), jnp.float32),
        "ln_b": jnp.zeros((1, D), jnp.float32),
        "head_w1": nrm(next(keys), (D, HEAD_HIDDEN), dtype=BF),
        "head_b1": jnp.zeros((1, HEAD_HIDDEN), jnp.float32),
        "head_w2": nrm(next(keys), (HEAD_HIDDEN, OUT_DIM), dtype=BF),
        "head_b2": jnp.zeros((1, OUT_DIM), jnp.float32),
        "blocks": {
            "ln1_g": jnp.ones((DEPTH, 1, D), jnp.float32),
            "ln1_b": jnp.zeros((DEPTH, 1, D), jnp.float32),
            "qkv_w": nrm(next(keys), (DEPTH, D, H3), dtype=BF),
            "qkv_b": jnp.zeros((DEPTH, 1, H3), jnp.float32),
            "proj_w": nrm(next(keys), (DEPTH, D, D), dtype=BF),
            "proj_b": jnp.zeros((DEPTH, 1, D), jnp.float32),
            "ln2_g": jnp.ones((DEPTH, 1, D), jnp.float32),
            "ln2_b": jnp.zeros((DEPTH, 1, D), jnp.float32),
            "fc1_w": nrm(next(keys), (DEPTH, D, MH), dtype=BF),
            "fc1_b": jnp.zeros((DEPTH, 1, MH), jnp.float32),
            "fc2_w": nrm(next(keys), (DEPTH, MH, D), dtype=BF),
            "fc2_b": jnp.zeros((DEPTH, 1, D), jnp.float32),
        },
    }


def raw_dinov2_forward(params, frame):
    """frame: NCHW float32 [B, 3, IMG, IMG] -> logits [B, 11]."""
    B = frame.shape[0]
    patches = extract_patches(frame)                      # (B, P, 588)
    P = patches.shape[1]
    T = P + 1
    Tp = ((T + 7) // 8) * 8                               # pad tokens to sublane mult

    # patch embed + CLS + pos + pad, fused (one launch)
    x = embed_tokens(patches.reshape(B * P, -1), params["patch_w"],
                     params["patch_b"], params["cls"], params["pos"],
                     batch=B, n_patch=P, seq_pad=Tp)      # (B*Tp, D)

    # all transformer blocks + final LN + labels head, fused (one launch)
    return backbone_forward(x, params, batch=B, seq_pad=Tp, seq_real=T)  # (B, 11)


# ------------------------------ main -----------------------------------------
if __name__ == "__main__":
    key = jax.random.PRNGKey(0)
    pkey, xkey = jax.random.split(key)
    params = init_params(pkey)

    B = 2
    frame = jax.random.normal(xkey, (B, 3, IMG, IMG), dtype=jnp.float32)  # NCHW

    logits = raw_dinov2_forward(params, frame)
    logits = jax.block_until_ready(logits)
    assert logits.shape == (B, OUT_DIM) and logits.dtype == jnp.float32
    assert bool(jnp.all(jnp.isfinite(logits)))
    print("KERNEL_OK")
</pallas_src>

<mosaic_0001>
module attributes {stable_mosaic.version = 11 : i64} {
  func.func @_embed_kernel(%arg0: i32, %arg1: memref<8x588xf32, #tpu.memory_space<vmem>>, %arg2: memref<588x384xbf16, #tpu.memory_space<vmem>>, %arg3: memref<1x384xf32, #tpu.memory_space<vmem>>, %arg4: memref<1x384xf32, #tpu.memory_space<vmem>>, %arg5: memref<5x384xf32, #tpu.memory_space<vmem>>, %arg6: memref<16x384xf32, #tpu.memory_space<vmem>>) attributes {dimension_semantics = [#tpu.dimension_semantics<arbitrary>], iteration_bounds = array<i64: 1>, scalar_prefetch = 0 : i64, scratch_operands = 0 : i64, tpu.core_type = #tpu.core_type<tc>, window_params = [{pipeline_mode = #tpu.pipeline_mode<synchronous>, transform_indices = @transform_0, window_bounds = array<i64: 8, 588>}, {pipeline_mode = #tpu.pipeline_mode<synchronous>, transform_indices = @transform_1, window_bounds = array<i64: 588, 384>}, {pipeline_mode = #tpu.pipeline_mode<synchronous>, transform_indices = @transform_2, window_bounds = array<i64: 1, 384>}, {pipeline_mode = #tpu.pipeline_mode<synchronous>, transform_indices = @transform_3, window_bounds = array<i64: 1, 384>}, {pipeline_mode = #tpu.pipeline_mode<synchronous>, transform_indices = @transform_4, window_bounds = array<i64: 5, 384>}, {pipeline_mode = #tpu.pipeline_mode<synchronous>, transform_indices = @transform_5, window_bounds = array<i64: 16, 384>}]} {
    %c0 = arith.constant 0 : index
    %c0_0 = arith.constant 0 : index
    %0 = vector.load %arg1[%c0, %c0_0] : memref<8x588xf32, #tpu.memory_space<vmem>>, vector<8x588xf32>
    %1 = arith.truncf %0 : vector<8x588xf32> to vector<8x588xbf16>
    %c0_1 = arith.constant 0 : index
    %c0_2 = arith.constant 0 : index
    %2 = vector.load %arg2[%c0_1, %c0_2] : memref<588x384xbf16, #tpu.memory_space<vmem>>, vector<588x384xbf16>
    %cst = arith.constant dense<0.000000e+00> : vector<8x384xf32>
    %3 = tpu.matmul %1, %2, %cst {dimension_numbers = #tpu.dot_dimension_numbers<[1], [0], [0], [1], [0, 0, 1, 1], [], []>} : vector<8x588xbf16>, vector<588x384xbf16>, vector<8x384xf32> -> vector<8x384xf32>
    %c0_3 = arith.constant 0 : index
    %c0_4 = arith.constant 0 : index
    %4 = vector.load %arg3[%c0_3, %c0_4] : memref<1x384xf32, #tpu.memory_space<vmem>>, vector<1x384xf32>
    %5 = vector.broadcast %4 : vector<1x384xf32> to vector<8x384xf32>
    %6 = arith.addf %3, %5 : vector<8x384xf32>
    %c0_5 = arith.constant 0 : index
    %c0_6 = arith.constant 0 : index
    %7 = vector.load %arg4[%c0_5, %c0_6] : memref<1x384xf32, #tpu.memory_space<vmem>>, vector<1x384xf32>
    %c0_7 = arith.constant 0 : index
    %c0_8 = arith.constant 0 : index
    %8 = vector.load %arg5[%c0_7, %c0_8] : memref<5x384xf32, #tpu.memory_space<vmem>>, vector<1x384xf32>
    %9 = arith.addf %7, %8 : vector<1x384xf32>
    %c1 = arith.constant 1 : index
    %c0_9 = arith.constant 0 : index
    %10 = vector.load %arg5[%c1, %c0_9] : memref<5x384xf32, #tpu.memory_space<vmem>>, vector<4x384xf32>
    %11 = vector.extract_strided_slice %6 {offsets = [0, 0], sizes = [4, 384], strides = [1, 1]} : vector<8x384xf32> to vector<4x384xf32>
    %12 = arith.addf %11, %10 : vector<4x384xf32>
    %cst_10 = arith.constant 0.000000e+00 : f32
    %13 = vector.broadcast %cst_10 : f32 to vector<3x384xf32>
    %14 = vector.extract_strided_slice %6 {offsets = [4, 0], sizes = [4, 384], strides = [1, 1]} : vector<8x384xf32> to vector<4x384xf32>
    %15 = arith.addf %14, %10 : vector<4x384xf32>
    %cst_11 = arith.constant 0.000000e+00 : f32
    %16 = vector.broadcast %cst_11 : f32 to vector<3x384xf32>
    %17 = tpu.concatenate %9, %12, %13, %9, %15, %16 in 0 : vector<1x384xf32>, vector<4x384xf32>, vector<3x384xf32>, vector<1x384xf32>, vector<4x384xf32>, vector<3x384xf32> -> vector<16x384xf32>
    %c0_12 = arith.constant 0 : index
    %c0_13 = arith.constant 0 : index
    %18 = vector.load %arg6[%c0_12, %c0_13] : memref<16x384xf32, #tpu.memory_space<vmem>>, vector<16x384xf32>
    tpu.vector_store %arg6[%c0_12, %c0_13], %17 {strides = array<i32>} : memref<16x384xf32, #tpu.memory_space<vmem>>, vector<16x384xf32>,
    return
  }
  func.func @transform_0(%arg0: i32) -> (i32, i32) {
    %c0_i32 = arith.constant 0 : i32
    %c0_i32_0 = arith.constant 0 : i32
    %c0_i32_1 = arith.constant 0 : i32
    return %c0_i32, %c0_i32_0 : i32, i32
  }
  func.func @transform_1(%arg0: i32) -> (i32, i32) {
    %c0_i32 = arith.constant 0 : i32
    %c0_i32_0 = arith.constant 0 : i32
    %c0_i32_1 = arith.constant 0 : i32
    return %c0_i32, %c0_i32_0 : i32, i32
  }
  func.func @transform_2(%arg0: i32) -> (i32, i32) {
    %c0_i32 = arith.constant 0 : i32
    %c0_i32_0 = arith.constant 0 : i32
    %c0_i32_1 = arith.constant 0 : i32
    return %c0_i32, %c0_i32_0 : i32, i32
  }
  func.func @transform_3(%arg0: i32) -> (i32, i32) {
    %c0_i32 = arith.constant 0 : i32
    %c0_i32_0 = arith.constant 0 : i32
    %c0_i32_1 = arith.constant 0 : i32
    return %c0_i32, %c0_i32_0 : i32, i32
  }
  func.func @transform_4(%arg0: i32) -> (i32, i32) {
    %c0_i32 = arith.constant 0 : i32
    %c0_i32_0 = arith.constant 0 : i32
    %c0_i32_1 = arith.constant 0 : i32
    return %c0_i32, %c0_i32_0 : i32, i32
  }
  func.func @transform_5(%arg0: i32) -> (i32, i32) {
    %c0_i32 = arith.constant 0 : i32
    %c0_i32_0 = arith.constant 0 : i32
    %c0_i32_1 = arith.constant 0 : i32
    return %c0_i32, %c0_i32_0 : i32, i32
  }
}

</mosaic_0001>

<llo_original>
// kernel: tpu_custom_call.1
$region0: #{tpu_custom_call.1}
  #allocation0 [shape = 'u32[]', space=smem, size = 0x4, offset = 0x4, fixed_abs, tag = 'smem constant byte address 0x4 - core index']
  #allocation1 [shape = 'u32[72,128]{1,0:T(1,128)}', space=vmem, size = 0x9000, scoped, tag = 'internal scratch']
  %s0 = inlined_call_operand.hbm [shape: f32[8,588], index: 0, kind: input, shape index: {}]
  %s1 = inlined_call_operand.hbm [shape: bf16[588,384], index: 1, kind: input, shape index: {}]
  %s2 = inlined_call_operand.hbm [shape: f32[1,384], index: 2, kind: input, shape index: {}]
  %s3 = inlined_call_operand.hbm [shape: f32[1,384], index: 3, kind: input, shape index: {}]
  %s4 = inlined_call_operand.hbm [shape: f32[5,384], index: 4, kind: input, shape index: {}]
  %s5 = inlined_call_operand.hbm [shape: f32[16,384], index: 5, kind: output, shape index: {}]
  %s6 = sld [smem:[#allocation0]]
  $region50: #{tpu_custom_call.1} parent=0
    _
  %s8 = ssub.s32 1, %s6
  %s9 = scalar_select 0, %s8, %s6
  $region1: #{tpu_custom_call.1} parent=0
    #allocation2 [shape = 'u8[20480]{0}', space=vmem, size = 0x5000, scoped, tag = 'input window, operand 0, single buffered']
    #allocation3 [shape = 's32[1]{0}', space=sflag, size = 0x4, scoped, tag = 'scoped memory for tpu_custom_call.1']
    #allocation4 [shape = 's32[1]{0}', space=sflag, size = 0x4, scoped, tag = 'scoped memory for tpu_custom_call.1']
    #allocation5 [shape = 'u8[454656]{0}', space=vmem, size = 0x6f000, scoped, tag = 'input window, operand 1, single buffered']
    #allocation6 [shape = 's32[1]{0}', space=sflag, size = 0x4, scoped, tag = 'scoped memory for tpu_custom_call.1']
    #allocation7 [shape = 'u8[1536]{0}', space=vmem, size = 0x800, scoped, tag = 'input window, operand 2, single buffered']
    #allocation8 [shape = 'u8[1536]{0}', space=vmem, size = 0x800, scoped, tag = 'input window, operand 3, single buffered']
    #allocation9 [shape = 's32[1]{0}', space=sflag, size = 0x4, scoped, tag = 'scoped memory for tpu_custom_call.1']
    #allocation10 [shape = 'u8[12288]{0}', space=vmem, size = 0x3000, scoped, tag = 'input window, operand 4, single buffered']
    #allocation11 [shape = 'u8[24576]{0}', space=vmem, size = 0x6000, scoped, tag = 'output window, operand 0, single buffered']
    %10 = vsyncpa [#allocation3], 0
    %11 = vsyncpa [#allocation6], 0
    %12 = vsyncpa [#allocation9], 0
    %13 = vsyncpa [#allocation4], 0
    // Predicated region
    $region2: #{tpu_custom_call.1} parent=1 // pred_check
      _
    $region3: #{tpu_custom_call.1} parent=1 // pred_check_branch
      %15 = sbr.rel (0) target = $region5
    $region4: #{tpu_custom_call.1} parent=1 // pred_region
      %17 = vsyncadd [#allocation3], 0
      %s19 = sshll.u32 %s0, 4
      %s20 = int_to_ptr.hbm [resolvable:$true] %s19
      %s21 = sshll.u32 [#allocation2], 4
      %s22 = int_to_ptr.vmem [resolvable:$true] %s21
      %24 = dma.hbm_to_vmem [thread:$0]  %s20, 640, %s22, [#allocation3]
    $region5: #{tpu_custom_call.1} parent=1 // pred_fallthru
      _
    // Predicated region
    $region6: #{tpu_custom_call.1} parent=1 // pred_check
      _
    $region7: #{tpu_custom_call.1} parent=1 // pred_check_branch
      %26 = sbr.rel (0) target = $region9
    $region8: #{tpu_custom_call.1} parent=1 // pred_region
      %28 = vsyncadd [#allocation6], 0
      %s29 = sshll.u32 %s1, 4
      %s30 = int_to_ptr.hbm [resolvable:$true] %s29
      %s31 = sshll.u32 [#allocation5], 4
      %s32 = int_to_ptr.vmem [resolvable:$true] %s31
      %37 = dma.hbm_to_vmem [thread:$0]  %s30, 14208, %s32, [#allocation6], 192, 192, 12
    $region9: #{tpu_custom_call.1} parent=1 // pred_fallthru
      _
    // Predicated region
    $region10: #{tpu_custom_call.1} parent=1 // pred_check
      _
    $region11: #{tpu_custom_call.1} parent=1 // pred_check_branch
      %39 = sbr.rel (0) target = $region13
    $region12: #{tpu_custom_call.1} parent=1 // pred_region
      %41 = vsyncadd [#allocation6], 0
      %s43 = sshll.u32 %s2, 4
      %s44 = int_to_ptr.hbm [resolvable:$true] %s43
      %s45 = sshll.u32 [#allocation7], 4
      %s46 = int_to_ptr.vmem [resolvable:$true] %s45
      %48 = dma.hbm_to_vmem [thread:$0]  %s44, 48, %s46, [#allocation6]
    $region13: #{tpu_custom_call.1} parent=1 // pred_fallthru
      _
    // Predicated region
    $region14: #{tpu_custom_call.1} parent=1 // pred_check
      _
    $region15: #{tpu_custom_call.1} parent=1 // pred_check_branch
      %50 = sbr.rel (0) target = $region17
    $region16: #{tpu_custom_call.1} parent=1 // pred_region
      %52 = vsyncadd [#allocation9], 0
      %s54 = sshll.u32 %s3, 4
      %s55 = int_to_ptr.hbm [resolvable:$true] %s54
      %s56 = sshll.u32 [#allocation8], 4
      %s57 = int_to_ptr.vmem [resolvable:$true] %s56
      %59 = dma.hbm_to_vmem [thread:$0]  %s55, 48, %s57, [#allocation9]
    $region17: #{tpu_custom_call.1} parent=1 // pred_fallthru
      _
    // Predicated region
    $region18: #{tpu_custom_call.1} parent=1 // pred_check
      _
    $region19: #{tpu_custom_call.1} parent=1 // pred_check_branch
      %61 = sbr.rel (0) target = $region21
    $region20: #{tpu_custom_call.1} parent=1 // pred_region
      %63 = vsyncadd [#allocation9], 0
      %s65 = sshll.u32 %s4, 4
      %s66 = int_to_ptr.hbm [resolvable:$true] %s65
      %s67 = sshll.u32 [#allocation10], 4
      %s68 = int_to_ptr.vmem [resolvable:$true] %s67
      %70 = dma.hbm_to_vmem [thread:$0]  %s66, 384, %s68, [#allocation9]
    $region21: #{tpu_custom_call.1} parent=1 // pred_fallthru
      _
    // Predicated region
    $region22: #{tpu_custom_call.1} parent=1 // pred_check
      _
    $region23: #{tpu_custom_call.1} parent=1 // pred_check_branch
      %72 = sbr.rel (0) target = $region25
    $region24: #{tpu_custom_call.1} parent=1 // pred_region
      %74 = dma.done [#allocation3], 640
    $region25: #{tpu_custom_call.1} parent=1 // pred_fallthru
      _
    // Predicated region
    $region26: #{tpu_custom_call.1} parent=1 // pred_check
      _
    $region27: #{tpu_custom_call.1} parent=1 // pred_check_branch
      %76 = sbr.rel (0) target = $region29
    $region28: #{tpu_custom_call.1} parent=1 // pred_region
      %78 = dma.done [#allocation6], 14208
    $region29: #{tpu_custom_call.1} parent=1 // pred_fallthru
      _
    // Predicated region
    $region30: #{tpu_custom_call.1} parent=1 // pred_check
      _
    $region31: #{tpu_custom_call.1} parent=1 // pred_check_branch
      %80 = sbr.rel (0) target = $region33
    $region32: #{tpu_custom_call.1} parent=1 // pred_region
      %82 = dma.done [#allocation6], 48
    $region33: #{tpu_custom_call.1} parent=1 // pred_fallthru
      _
    // Predicated region
    $region34: #{tpu_custom_call.1} parent=1 // pred_check
      _
    $region35: #{tpu_custom_call.1} parent=1 // pred_check_branch
      %84 = sbr.rel (0) target = $region37
    $region36: #{tpu_custom_call.1} parent=1 // pred_region
      %86 = dma.done [#allocation9], 48
    $region37: #{tpu_custom_call.1} parent=1 // pred_fallthru
      _
    // Predicated region
    $region38: #{tpu_custom_call.1} parent=1 // pred_check
      _
    $region39: #{tpu_custom_call.1} parent=1 // pred_check_branch
      %88 = sbr.rel (0) target = $region41
    $region40: #{tpu_custom_call.1} parent=1 // pred_region
      %90 = dma.done [#allocation9], 384
    $region41: #{tpu_custom_call.1} parent=1 // pred_fallthru
      _
    %v92 = vld [vmem:[#allocation2] sm:$0xff]
    %v93 = vld [vmem:[#allocation2 + $0x8] sm:$0xff]
    %v94 = vld [vmem:[#allocation2 + $0x10] sm:$0xff]
    %v95 = vld [vmem:[#allocation2 + $0x18] sm:$0xff]
    %v96 = vld [vmem:[#allocation2 + $0x20] sm:$0xff]
    %v97 = vpack.c.bf16 %v92, %v92
    %v98 = vpack.c.bf16 %v93, %v93
    %v99 = vpack.c.bf16 %v94, %v94
    %v100 = vpack.c.bf16 %v95, %v95
    %v101 = vpack.c.bf16 %v96, %v96
    %v102 = vld [vmem:[#allocation5] sm:$0xff]
    %v103 = vld [vmem:[#allocation5 + $0x8] sm:$0xf]
    %v104 = vld [vmem:[#allocation5 + $0xc] sm:$0xff]
    %v105 = vld [vmem:[#allocation5 + $0x14] sm:$0xf]
    %v106 = vld [vmem:[#allocation5 + $0x18] sm:$0xff]
    %v107 = vld [vmem:[#allocation5 + $0x20] sm:$0xf]
    %v108 = vld [vmem:[#allocation5 + $0x24] sm:$0xff]
    %v109 = vld [vmem:[#allocation5 + $0x2c] sm:$0xf]
    %v110 = vld [vmem:[#allocation5 + $0x30] sm:$0xff]
    %v111 = vld [vmem:[#allocation5 + $0x38] sm:$0xf]
    %v112 = vld [vmem:[#allocation5 + $0x3c] sm:$0xff]
    %v113 = vld [vmem:[#allocation5 + $0x44] sm:$0xf]
    %v114 = vld [vmem:[#allocation5 + $0x48] sm:$0xff]
    %v115 = vld [vmem:[#allocation5 + $0x50] sm:$0xf]
    %v116 = vld [vmem:[#allocation5 + $0x54] sm:$0xff]
    %v117 = vld [vmem:[#allocation5 + $0x5c] sm:$0xf]
    %v118 = vld [vmem:[#allocation5 + $0x60] sm:$0xff]
    %v119 = vld [vmem:[#allocation5 + $0x68] sm:$0xf]
    %v120 = vld [vmem:[#allocation5 + $0x6c] sm:$0xff]
    %v121 = vld [vmem:[#allocation5 + $0x74] sm:$0xf]
    %v122 = vld [vmem:[#allocation5 + $0x78] sm:$0xff]
    %v123 = vld [vmem:[#allocation5 + $0x80] sm:$0xf]
    %v124 = vld [vmem:[#allocation5 + $0x84] sm:$0xff]
    %v125 = vld [vmem:[#allocation5 + $0x8c] sm:$0xf]
    %v126 = vld [vmem:[#allocation5 + $0x90] sm:$0xff]
    %v127 = vld [vmem:[#allocation5 + $0x98] sm:$0xf]
    %v128 = vld [vmem:[#allocation5 + $0x9c] sm:$0xff]
    %v129 = vld [vmem:[#allocation5 + $0xa4] sm:$0xf]
    %v130 = vld [vmem:[#allocation5 + $0xa8] sm:$0xff]
    %v131 = vld [vmem:[#allocation5 + $0xb0] sm:$0xf]
    %v132 = vld [vmem:[#allocation5 + $0xb4] sm:$0xff]
    %v133 = vld [vmem:[#allocation5 + $0xbc] sm:$0xf]
    %v134 = vld [vmem:[#allocation5 + $0xc0] sm:$0xff]
    %v135 = vld [vmem:[#allocation5 + $0xc8] sm:$0xf]
    %v136 = vld [vmem:[#allocation5 + $0xcc] sm:$0xff]
    %v137 = vld [vmem:[#allocation5 + $0xd4] sm:$0xf]
    %v138 = vld [vmem:[#allocation5 + $0xd8] sm:$0xff]
    %v139 = vld [vmem:[#allocation5 + $0xe0] sm:$0xf]
    %v140 = vld [vmem:[#allocation5 + $0xe4] sm:$0xff]
    %v141 = vld [vmem:[#allocation5 + $0xec] sm:$0xf]
    %v142 = vld [vmem:[#allocation5 + $0xf0] sm:$0xff]
    %v143 = vld [vmem:[#allocation5 + $0xf8] sm:$0xf]
    %v144 = vld [vmem:[#allocation5 + $0xfc] sm:$0xff]
    %v145 = vld [vmem:[#allocation5 + $0x104] sm:$0xf]
    %v146 = vld [vmem:[#allocation5 + $0x108] sm:$0xff]
    %v147 = vld [vmem:[#allocation5 + $0x110] sm:$0xf]
    %v148 = vld [vmem:[#allocation5 + $0x114] sm:$0xff]
    %v149 = vld [vmem:[#allocation5 + $0x11c] sm:$0xf]
    %v150 = vld [vmem:[#allocation5 + $0x120] sm:$0xff]
    %v151 = vld [vmem:[#allocation5 + $0x128] sm:$0xf]
    %v152 = vld [vmem:[#allocation5 + $0x12c] sm:$0xff]
    %v153 = vld [vmem:[#allocation5 + $0x134] sm:$0xf]
    %v154 = vld [vmem:[#allocation5 + $0x138] sm:$0xff]
    %v155 = vld [vmem:[#allocation5 + $0x140] sm:$0xf]
    %v156 = vld [vmem:[#allocation5 + $0x144] sm:$0xff]
    %v157 = vld [vmem:[#allocation5 + $0x14c] sm:$0xf]
    %v158 = vld [vmem:[#allocation5 + $0x150] sm:$0xff]
    %v159 = vld [vmem:[#allocation5 + $0x158] sm:$0xf]
    %v160 = vld [vmem:[#allocation5 + $0x15c] sm:$0xff]
    %v161 = vld [vmem:[#allocation5 + $0x164] sm:$0xf]
    %v162 = vld [vmem:[#allocation5 + $0x168] sm:$0xff]
    %v163 = vld [vmem:[#allocation5 + $0x170] sm:$0xf]
    %v164 = vld [vmem:[#allocation5 + $0x174] sm:$0xff]
    %v165 = vld [vmem:[#allocation5 + $0x17c] sm:$0xf]
    %v166 = vld [vmem:[#allocation5 + $0x180] sm:$0xff]
    %v167 = vld [vmem:[#allocation5 + $0x188] sm:$0xf]
    %v168 = vld [vmem:[#allocation5 + $0x18c] sm:$0xff]
    %v169 = vld [vmem:[#allocation5 + $0x194] sm:$0xf]
    %v170 = vld [vmem:[#allocation5 + $0x198] sm:$0xff]
    %v171 = vld [vmem:[#allocation5 + $0x1a0] sm:$0xf]
    %v172 = vld [vmem:[#allocation5 + $0x1a4] sm:$0xff]
    %v173 = vld [vmem:[#allocation5 + $0x1ac] sm:$0xf]
    %v174 = vld [vmem:[#allocation5 + $0x1b0] sm:$0xff]
    %v175 = vld [vmem:[#allocation5 + $0x1b8] sm:$0xf]
    %v176 = vld [vmem:[#allocation5 + $0x1bc] sm:$0xff]
    %v177 = vld [vmem:[#allocation5 + $0x1c4] sm:$0xf]
    %v178 = vld [vmem:[#allocation5 + $0x1c8] sm:$0xff]
    %v179 = vld [vmem:[#allocation5 + $0x1d0] sm:$0xf]
    %v180 = vld [vmem:[#allocation5 + $0x1d4] sm:$0xff]
    %v181 = vld [vmem:[#allocation5 + $0x1dc] sm:$0xf]
    %v182 = vld [vmem:[#allocation5 + $0x1e0] sm:$0xff]
    %v183 = vld [vmem:[#allocation5 + $0x1e8] sm:$0xf]
    %v184 = vld [vmem:[#allocation5 + $0x1ec] sm:$0xff]
    %v185 = vld [vmem:[#allocation5 + $0x1f4] sm:$0xf]
    %v186 = vld [vmem:[#allocation5 + $0x1f8] sm:$0xff]
    %v187 = vld [vmem:[#allocation5 + $0x200] sm:$0xf]
    %v188 = vld [vmem:[#allocation5 + $0x204] sm:$0xff]
    %v189 = vld [vmem:[#allocation5 + $0x20c] sm:$0xf]
    %v190 = vld [vmem:[#allocation5 + $0x210] sm:$0xff]
    %v191 = vld [vmem:[#allocation5 + $0x218] sm:$0xf]
    %v192 = vld [vmem:[#allocation5 + $0x21c] sm:$0xff]
    %v193 = vld [vmem:[#allocation5 + $0x224] sm:$0xf]
    %v194 = vld [vmem:[#allocation5 + $0x228] sm:$0xff]
    %v195 = vld [vmem:[#allocation5 + $0x230] sm:$0xf]
    %v196 = vld [vmem:[#allocation5 + $0x234] sm:$0xff]
    %v197 = vld [vmem:[#allocation5 + $0x23c] sm:$0xf]
    %v198 = vld [vmem:[#allocation5 + $0x240] sm:$0xff]
    %v199 = vld [vmem:[#allocation5 + $0x248] sm:$0xf]
    %v200 = vld [vmem:[#allocation5 + $0x24c] sm:$0xff]
    %v201 = vld [vmem:[#allocation5 + $0x254] sm:$0xf]
    %v202 = vld [vmem:[#allocation5 + $0x258] sm:$0xff]
    %v203 = vld [vmem:[#allocation5 + $0x260] sm:$0xf]
    %v204 = vld [vmem:[#allocation5 + $0x264] sm:$0xff]
    %v205 = vld [vmem:[#allocation5 + $0x26c] sm:$0xf]
    %v206 = vld [vmem:[#allocation5 + $0x270] sm:$0xff]
    %v207 = vld [vmem:[#allocation5 + $0x278] sm:$0xf]
    %v208 = vld [vmem:[#allocation5 + $0x27c] sm:$0xff]
    %v209 = vld [vmem:[#allocation5 + $0x284] sm:$0xf]
    %v210 = vld [vmem:[#allocation5 + $0x288] sm:$0xff]
    %v211 = vld [vmem:[#allocation5 + $0x290] sm:$0xf]
    %v212 = vld [vmem:[#allocation5 + $0x294] sm:$0xff]
    %v213 = vld [vmem:[#allocation5 + $0x29c] sm:$0xf]
    %v214 = vld [vmem:[#allocation5 + $0x2a0] sm:$0xff]
    %v215 = vld [vmem:[#allocation5 + $0x2a8] sm:$0xf]
    %v216 = vld [vmem:[#allocation5 + $0x2ac] sm:$0xff]
    %v217 = vld [vmem:[#allocation5 + $0x2b4] sm:$0xf]
    %v218 = vld [vmem:[#allocation5 + $0x2b8] sm:$0xff]
    %v219 = vld [vmem:[#allocation5 + $0x2c0] sm:$0xf]
    %v220 = vld [vmem:[#allocation5 + $0x2c4] sm:$0xff]
    %v221 = vld [vmem:[#allocation5 + $0x2cc] sm:$0xf]
    %v222 = vld [vmem:[#allocation5 + $0x2d0] sm:$0xff]
    %v223 = vld [vmem:[#allocation5 + $0x2d8] sm:$0xf]
    %v224 = vld [vmem:[#allocation5 + $0x2dc] sm:$0xff]
    %v225 = vld [vmem:[#allocation5 + $0x2e4] sm:$0xf]
    %v226 = vld [vmem:[#allocation5 + $0x2e8] sm:$0xff]
    %v227 = vld [vmem:[#allocation5 + $0x2f0] sm:$0xf]
    %v228 = vld [vmem:[#allocation5 + $0x2f4] sm:$0xff]
    %v229 = vld [vmem:[#allocation5 + $0x2fc] sm:$0xf]
    %v230 = vld [vmem:[#allocation5 + $0x300] sm:$0xff]
    %v231 = vld [vmem:[#allocation5 + $0x308] sm:$0xf]
    %v232 = vld [vmem:[#allocation5 + $0x30c] sm:$0xff]
    %v233 = vld [vmem:[#allocation5 + $0x314] sm:$0xf]
    %v234 = vld [vmem:[#allocation5 + $0x318] sm:$0xff]
    %v235 = vld [vmem:[#allocation5 + $0x320] sm:$0xf]
    %v236 = vld [vmem:[#allocation5 + $0x324] sm:$0xff]
    %v237 = vld [vmem:[#allocation5 + $0x32c] sm:$0xf]
    %v238 = vld [vmem:[#allocation5 + $0x330] sm:$0xff]
    %v239 = vld [vmem:[#allocation5 + $0x338] sm:$0xf]
    %v240 = vld [vmem:[#allocation5 + $0x33c] sm:$0xff]
    %v241 = vld [vmem:[#allocation5 + $0x344] sm:$0xf]
    %v242 = vld [vmem:[#allocation5 + $0x348] sm:$0xff]
    %v243 = vld [vmem:[#allocation5 + $0x350] sm:$0xf]
    %v244 = vld [vmem:[#allocation5 + $0x354] sm:$0xff]
    %v245 = vld [vmem:[#allocation5 + $0x35c] sm:$0xf]
    %v246 = vld [vmem:[#allocation5 + $0x360] sm:$0xff]
    %v247 = vld [vmem:[#allocation5 + $0x368] sm:$0xf]
    %v248 = vld [vmem:[#allocation5 + $0x36c] sm:$0x33]
    %v249 = vld [vmem:[#allocation5 + $0x374] sm:$0x3]
    %v250 = vld [vmem:[#allocation7] sm:$0x7]
    %v252 = vperm.slane %v250, 0
    %v253 = vperm.slane %v250, 1
    %v254 = vperm.slane %v250, 2
    %v406 = vunpack.c.l.b16 %v102
    %v407 = vunpack.c.h.b16 %v102
    %v408 = vunpack.c.l.b16 %v103
    %v409 = vunpack.c.l.b16 %v104
    %v410 = vunpack.c.h.b16 %v104
    %v411 = vunpack.c.l.b16 %v105
    %v412 = vunpack.c.l.b16 %v106
    %v413 = vunpack.c.h.b16 %v106
    %v414 = vunpack.c.l.b16 %v107
    %v415 = vunpack.c.l.b16 %v108
    %v416 = vunpack.c.h.b16 %v108
    %v417 = vunpack.c.l.b16 %v109
    %v418 = vunpack.c.l.b16 %v110
    %v419 = vunpack.c.h.b16 %v110
    %v420 = vunpack.c.l.b16 %v111
    %v421 = vunpack.c.l.b16 %v112
    %v422 = vunpack.c.h.b16 %v112
    %v423 = vunpack.c.l.b16 %v113
    %v424 = vunpack.c.l.b16 %v114
    %v425 = vunpack.c.h.b16 %v114
    %v426 = vunpack.c.l.b16 %v115
    %v427 = vunpack.c.l.b16 %v116
    %v428 = vunpack.c.h.b16 %v116
    %v429 = vunpack.c.l.b16 %v117
    %v430 = vunpack.c.l.b16 %v118
    %v431 = vunpack.c.h.b16 %v118
    %v432 = vunpack.c.l.b16 %v119
    %v433 = vunpack.c.l.b16 %v120
    %v434 = vunpack.c.h.b16 %v120
    %v435 = vunpack.c.l.b16 %v121
    %v436 = vunpack.c.l.b16 %v122
    %v437 = vunpack.c.h.b16 %v122
    %v438 = vunpack.c.l.b16 %v123
    %v439 = vunpack.c.l.b16 %v124
    %v440 = vunpack.c.h.b16 %v124
    %v441 = vunpack.c.l.b16 %v125
    %v442 = vunpack.c.l.b16 %v126
    %v443 = vunpack.c.h.b16 %v126
    %v444 = vunpack.c.l.b16 %v127
    %v445 = vunpack.c.l.b16 %v128
    %v446 = vunpack.c.h.b16 %v128
    %v447 = vunpack.c.l.b16 %v129
    %v448 = vunpack.c.l.b16 %v130
    %v449 = vunpack.c.h.b16 %v130
    %v450 = vunpack.c.l.b16 %v131
    %v451 = vunpack.c.l.b16 %v132
    %v452 = vunpack.c.h.b16 %v132
    %v453 = vunpack.c.l.b16 %v133
    %v454 = vunpack.c.l.b16 %v134
    %v455 = vunpack.c.h.b16 %v134
    %v456 = vunpack.c.l.b16 %v135
    %v457 = vunpack.c.l.b16 %v136
    %v458 = vunpack.c.h.b16 %v136
    %v459 = vunpack.c.l.b16 %v137
    %v460 = vunpack.c.l.b16 %v138
    %v461 = vunpack.c.h.b16 %v138
    %v462 = vunpack.c.l.b16 %v139
    %v463 = vunpack.c.l.b16 %v140
    %v464 = vunpack.c.h.b16 %v140
    %v465 = vunpack.c.l.b16 %v141
    %v466 = vunpack.c.l.b16 %v142
    %v467 = vunpack.c.h.b16 %v142
    %v468 = vunpack.c.l.b16 %v143
    %v469 = vunpack.c.l.b16 %v144
    %v470 = vunpack.c.h.b16 %v144
    %v471 = vunpack.c.l.b16 %v145
    %v472 = vunpack.c.l.b16 %v146
    %v473 = vunpack.c.h.b16 %v146
    %v474 = vunpack.c.l.b16 %v147
    %v475 = vunpack.c.l.b16 %v148
    %v476 = vunpack.c.h.b16 %v148
    %v477 = vunpack.c.l.b16 %v149
    %v478 = vunpack.c.l.b16 %v150
    %v479 = vunpack.c.h.b16 %v150
    %v480 = vunpack.c.l.b16 %v151
    %v481 = vunpack.c.l.b16 %v152
    %v482 = vunpack.c.h.b16 %v152
    %v483 = vunpack.c.l.b16 %v153
    %v484 = vunpack.c.l.b16 %v154
    %v485 = vunpack.c.h.b16 %v154
    %v486 = vunpack.c.l.b16 %v155
    %v487 = vunpack.c.l.b16 %v156
    %v488 = vunpack.c.h.b16 %v156
    %v489 = vunpack.c.l.b16 %v157
    %v490 = vunpack.c.l.b16 %v158
    %v491 = vunpack.c.h.b16 %v158
    %v492 = vunpack.c.l.b16 %v159
    %v493 = vunpack.c.l.b16 %v160
    %v494 = vunpack.c.h.b16 %v160
    %v495 = vunpack.c.l.b16 %v161
    %v496 = vunpack.c.l.b16 %v162
    %v497 = vunpack.c.h.b16 %v162
    %v498 = vunpack.c.l.b16 %v163
    %v499 = vunpack.c.l.b16 %v164
    %v500 = vunpack.c.h.b16 %v164
    %v501 = vunpack.c.l.b16 %v165
    %v502 = vunpack.c.l.b16 %v166
    %v503 = vunpack.c.h.b16 %v166
    %v504 = vunpack.c.l.b16 %v167
    %v505 = vunpack.c.l.b16 %v168
    %v506 = vunpack.c.h.b16 %v168
    %v507 = vunpack.c.l.b16 %v169
    %v508 = vunpack.c.l.b16 %v170
    %v509 = vunpack.c.h.b16 %v170
    %v510 = vunpack.c.l.b16 %v171
    %v511 = vunpack.c.l.b16 %v172
    %v512 = vunpack.c.h.b16 %v172
    %v513 = vunpack.c.l.b16 %v173
    %v514 = vunpack.c.l.b16 %v174
    %v515 = vunpack.c.h.b16 %v174
    %v516 = vunpack.c.l.b16 %v175
    %v517 = vunpack.c.l.b16 %v176
    %v518 = vunpack.c.h.b16 %v176
    %v519 = vunpack.c.l.b16 %v177
    %v520 = vunpack.c.l.b16 %v178
    %v521 = vunpack.c.h.b16 %v178
    %v522 = vunpack.c.l.b16 %v179
    %v523 = vunpack.c.l.b16 %v180
    %v524 = vunpack.c.h.b16 %v180
    %v525 = vunpack.c.l.b16 %v181
    %v526 = vunpack.c.l.b16 %v182
    %v527 = vunpack.c.h.b16 %v182
    %v528 = vunpack.c.l.b16 %v183
    %v529 = vunpack.c.l.b16 %v184
    %v530 = vunpack.c.h.b16 %v184
    %v531 = vunpack.c.l.b16 %v185
    %v532 = vunpack.c.l.b16 %v186
    %v533 = vunpack.c.h.b16 %v186
    %v534 = vunpack.c.l.b16 %v187
    %v535 = vunpack.c.l.b16 %v188
    %v536 = vunpack.c.h.b16 %v188
    %v537 = vunpack.c.l.b16 %v189
    %v538 = vunpack.c.l.b16 %v190
    %v539 = vunpack.c.h.b16 %v190
    %v540 = vunpack.c.l.b16 %v191
    %v541 = vunpack.c.l.b16 %v192
    %v542 = vunpack.c.h.b16 %v192
    %v543 = vunpack.c.l.b16 %v193
    %v544 = vunpack.c.l.b16 %v194
    %v545 = vunpack.c.h.b16 %v194
    %v546 = vunpack.c.l.b16 %v195
    %v547 = vunpack.c.l.b16 %v196
    %v548 = vunpack.c.h.b16 %v196
    %v549 = vunpack.c.l.b16 %v197
    %v550 = vunpack.c.l.b16 %v198
    %v551 = vunpack.c.h.b16 %v198
    %v552 = vunpack.c.l.b16 %v199
    %v553 = vunpack.c.l.b16 %v200
    %v554 = vunpack.c.h.b16 %v200
    %v555 = vunpack.c.l.b16 %v201
    %v556 = vunpack.c.l.b16 %v202
    %v557 = vunpack.c.h.b16 %v202
    %v558 = vunpack.c.l.b16 %v203
    %v559 = vunpack.c.l.b16 %v204
    %v560 = vunpack.c.h.b16 %v204
    %v561 = vunpack.c.l.b16 %v205
    %v562 = vunpack.c.l.b16 %v206
    %v563 = vunpack.c.h.b16 %v206
    %v564 = vunpack.c.l.b16 %v207
    %v565 = vunpack.c.l.b16 %v208
    %v566 = vunpack.c.h.b16 %v208
    %v567 = vunpack.c.l.b16 %v209
    %v568 = vunpack.c.l.b16 %v210
    %v569 = vunpack.c.h.b16 %v210
    %v570 = vunpack.c.l.b16 %v211
    %v571 = vunpack.c.l.b16 %v212
    %v572 = vunpack.c.h.b16 %v212
    %v573 = vunpack.c.l.b16 %v213
    %v574 = vunpack.c.l.b16 %v214
    %v575 = vunpack.c.h.b16 %v214
    %v576 = vunpack.c.l.b16 %v215
    %v577 = vunpack.c.l.b16 %v216
    %v578 = vunpack.c.h.b16 %v216
    %v579 = vunpack.c.l.b16 %v217
    %v580 = vunpack.c.l.b16 %v218
    %v581 = vunpack.c.h.b16 %v218
    %v582 = vunpack.c.l.b16 %v219
    %v583 = vunpack.c.l.b16 %v220
    %v584 = vunpack.c.h.b16 %v220
    %v585 = vunpack.c.l.b16 %v221
    %v586 = vunpack.c.l.b16 %v222
    %v587 = vunpack.c.h.b16 %v222
    %v588 = vunpack.c.l.b16 %v223
    %v589 = vunpack.c.l.b16 %v224
    %v590 = vunpack.c.h.b16 %v224
    %v591 = vunpack.c.l.b16 %v225
    %v592 = vunpack.c.l.b16 %v226
    %v593 = vunpack.c.h.b16 %v226
    %v594 = vunpack.c.l.b16 %v227
    %v595 = vunpack.c.l.b16 %v228
    %v596 = vunpack.c.h.b16 %v228
    %v597 = vunpack.c.l.b16 %v229
    %v598 = vunpack.c.l.b16 %v230
    %v599 = vunpack.c.h.b16 %v230
    %v600 = vunpack.c.l.b16 %v231
    %v601 = vunpack.c.l.b16 %v232
    %v602 = vunpack.c.h.b16 %v232
    %v603 = vunpack.c.l.b16 %v233
    %v604 = vunpack.c.l.b16 %v234
    %v605 = vunpack.c.h.b16 %v234
    %v606 = vunpack.c.l.b16 %v235
    %v607 = vunpack.c.l.b16 %v236
    %v608 = vunpack.c.h.b16 %v236
    %v609 = vunpack.c.l.b16 %v237
    %v610 = vunpack.c.l.b16 %v238
    %v611 = vunpack.c.h.b16 %v238
    %v612 = vunpack.c.l.b16 %v239
    %v613 = vunpack.c.l.b16 %v240
    %v614 = vunpack.c.h.b16 %v240
    %v615 = vunpack.c.l.b16 %v241
    %v616 = vunpack.c.l.b16 %v242
    %v617 = vunpack.c.h.b16 %v242
    %v618 = vunpack.c.l.b16 %v243
    %v619 = vunpack.c.l.b16 %v244
    %v620 = vunpack.c.h.b16 %v244
    %v621 = vunpack.c.l.b16 %v245
    %v622 = vunpack.c.l.b16 %v246
    %v623 = vunpack.c.h.b16 %v246
    %v624 = vunpack.c.l.b16 %v247
    %v625 = vunpack.c.l.b16 %v248
    %v626 = vunpack.c.h.b16 %v248
    %v627 = vunpack.c.l.b16 %v249
    %v628 = vpack.c.b16 %v409, %v406
    %v629 = vpack.c.b16 %v410, %v407
    %v630 = vpack.c.b16 %v411, %v408
    %v631 = vpack.c.b16 %v415, %v412
    %v632 = vpack.c.b16 %v416, %v413
    %v633 = vpack.c.b16 %v417, %v414
    %v634 = vpack.c.b16 %v421, %v418
    %v635 = vpack.c.b16 %v422, %v419
    %v636 = vpack.c.b16 %v423, %v420
    %v637 = vpack.c.b16 %v427, %v424
    %v638 = vpack.c.b16 %v428, %v425
    %v639 = vpack.c.b16 %v429, %v426
    %v640 = vpack.c.b16 %v433, %v430
    %v641 = vpack.c.b16 %v434, %v431
    %v642 = vpack.c.b16 %v435, %v432
    %v643 = vpack.c.b16 %v439, %v436
    %v644 = vpack.c.b16 %v440, %v437
    %v645 = vpack.c.b16 %v441, %v438
    %v646 = vpack.c.b16 %v445, %v442
    %v647 = vpack.c.b16 %v446, %v443
    %v648 = vpack.c.b16 %v447, %v444
    %v649 = vpack.c.b16 %v451, %v448
    %v650 = vpack.c.b16 %v452, %v449
    %v651 = vpack.c.b16 %v453, %v450
    %v652 = vpack.c.b16 %v457, %v454
    %v653 = vpack.c.b16 %v458, %v455
    %v654 = vpack.c.b16 %v459, %v456
    %v655 = vpack.c.b16 %v463, %v460
    %v656 = vpack.c.b16 %v464, %v461
    %v657 = vpack.c.b16 %v465, %v462
    %v658 = vpack.c.b16 %v469, %v466
    %v659 = vpack.c.b16 %v470, %v467
    %v660 = vpack.c.b16 %v471, %v468
    %v661 = vpack.c.b16 %v475, %v472
    %v662 = vpack.c.b16 %v476, %v473
    %v663 = vpack.c.b16 %v477, %v474
    %v664 = vpack.c.b16 %v481, %v478
    %v665 = vpack.c.b16 %v482, %v479
    %v666 = vpack.c.b16 %v483, %v480
    %v667 = vpack.c.b16 %v487, %v484
    %v668 = vpack.c.b16 %v488, %v485
    %v669 = vpack.c.b16 %v489, %v486
    %v670 = vpack.c.b16 %v493, %v490
    %v671 = vpack.c.b16 %v494, %v491
    %v672 = vpack.c.b16 %v495, %v492
    %v673 = vpack.c.b16 %v499, %v496
    %v674 = vpack.c.b16 %v500, %v497
    %v675 = vpack.c.b16 %v501, %v498
    %v676 = vpack.c.b16 %v505, %v502
    %v677 = vpack.c.b16 %v506, %v503
    %v678 = vpack.c.b16 %v507, %v504
    %v679 = vpack.c.b16 %v511, %v508
    %v680 = vpack.c.b16 %v512, %v509
    %v681 = vpack.c.b16 %v513, %v510
    %v682 = vpack.c.b16 %v517, %v514
    %v683 = vpack.c.b16 %v518, %v515
    %v684 = vpack.c.b16 %v519, %v516
    %v685 = vpack.c.b16 %v523, %v520
    %v686 = vpack.c.b16 %v524, %v521
    %v687 = vpack.c.b16 %v525, %v522
    %v688 = vpack.c.b16 %v529, %v526
    %v689 = vpack.c.b16 %v530, %v527
    %v690 = vpack.c.b16 %v531, %v528
    %v691 = vpack.c.b16 %v535, %v532
    %v692 = vpack.c.b16 %v536, %v533
    %v693 = vpack.c.b16 %v537, %v534
    %v694 = vpack.c.b16 %v541, %v538
    %v695 = vpack.c.b16 %v542, %v539
    %v696 = vpack.c.b16 %v543, %v540
    %v697 = vpack.c.b16 %v547, %v544
    %v698 = vpack.c.b16 %v548, %v545
    %v699 = vpack.c.b16 %v549, %v546
    %v700 = vpack.c.b16 %v553, %v550
    %v701 = vpack.c.b16 %v554, %v551
    %v702 = vpack.c.b16 %v555, %v552
    %v703 = vpack.c.b16 %v559, %v556
    %v704 = vpack.c.b16 %v560, %v557
    %v705 = vpack.c.b16 %v561, %v558
    %v706 = vpack.c.b16 %v565, %v562
    %v707 = vpack.c.b16 %v566, %v563
    %v708 = vpack.c.b16 %v567, %v564
    %v709 = vpack.c.b16 %v571, %v568
    %v710 = vpack.c.b16 %v572, %v569
    %v711 = vpack.c.b16 %v573, %v570
    %v712 = vpack.c.b16 %v577, %v574
    %v713 = vpack.c.b16 %v578, %v575
    %v714 = vpack.c.b16 %v579, %v576
    %v715 = vpack.c.b16 %v583, %v580
    %v716 = vpack.c.b16 %v584, %v581
    %v717 = vpack.c.b16 %v585, %v582
    %v718 = vpack.c.b16 %v589, %v586
    %v719 = vpack.c.b16 %v590, %v587
    %v720 = vpack.c.b16 %v591, %v588
    %v721 = vpack.c.b16 %v595, %v592
    %v722 = vpack.c.b16 %v596, %v593
    %v723 = vpack.c.b16 %v597, %v594
    %v724 = vpack.c.b16 %v601, %v598
    %v725 = vpack.c.b16 %v602, %v599
    %v726 = vpack.c.b16 %v603, %v600
    %v727 = vpack.c.b16 %v607, %v604
    %v728 = vpack.c.b16 %v608, %v605
    %v729 = vpack.c.b16 %v609, %v606
    %v730 = vpack.c.b16 %v613, %v610
    %v731 = vpack.c.b16 %v614, %v611
    %v732 = vpack.c.b16 %v615, %v612
    %v733 = vpack.c.b16 %v619, %v616
    %v734 = vpack.c.b16 %v620, %v617
    %v735 = vpack.c.b16 %v621, %v618
    %v736 = vpack.c.b16 %v625, %v622
    %v737 = vpack.c.b16 %v626, %v623
    %v738 = vpack.c.b16 %v627, %v624
    %vm847 = vcmask 621568
    %v849 = vsel %vm847, %v101, 0
    %vm851 = vcmask 1045504
    %v853 = vsel %vm851, %v736, 0
    %v856 = vsel %vm851, %v737, 0
    %v859 = vsel %vm851, %v738, 0
    %861 = vmatpush.bf16.msra.mxu0 %v649
    %862 = vmatpush.bf16.msra.mxu0 %v646
    %863 = vmatpush.bf16.msra.mxu0 %v643
    %864 = vmatpush.bf16.msra.mxu0 %v640
    %865 = vmatpush.bf16.msra.mxu0 %v637
    %866 = vmatpush.bf16.msra.mxu0 %v634
    %867 = vmatpush.bf16.msra.mxu0 %v631
    %868 = vmatpush.bf16.msra.mxu0 %v628
    %869 = vmatmul.bf16.gmra.mxu0 %v97
    %v870 = vpop.f32.mrf.mxu0
    %v871 = vadd.f32 %v252, %v870
    %v872 = vpop.f32.mrf.mxu0
    %873 = vdwg.mxu0
    %874 = vmatpush.bf16.msra.mxu0 %v673
    %875 = vmatpush.bf16.msra.mxu0 %v670
    %876 = vmatpush.bf16.msra.mxu0 %v667
    %877 = vmatpush.bf16.msra.mxu0 %v664
    %878 = vmatpush.bf16.msra.mxu0 %v661
    %879 = vmatpush.bf16.msra.mxu0 %v658
    %880 = vmatpush.bf16.msra.mxu0 %v655
    %881 = vmatpush.bf16.msra.mxu0 %v652
    %882 = vmatmul.bf16.gmra.mxu0 %v98
    %v883 = vpop.f32.mrf.mxu0
    %v884 = vadd.f32 %v871, %v883
    %v885 = vpop.f32.mrf.mxu0
    %886 = vdwg.mxu0
    %887 = vmatpush.bf16.msra.mxu0 %v697
    %888 = vmatpush.bf16.msra.mxu0 %v694
    %889 = vmatpush.bf16.msra.mxu0 %v691
    %890 = vmatpush.bf16.msra.mxu0 %v688
    %891 = vmatpush.bf16.msra.mxu0 %v685
    %892 = vmatpush.bf16.msra.mxu0 %v682
    %893 = vmatpush.bf16.msra.mxu0 %v679
    %894 = vmatpush.bf16.msra.mxu0 %v676
    %895 = vmatmul.bf16.gmra.mxu0 %v99
    %v896 = vpop.f32.mrf.mxu0
    %v897 = vadd.f32 %v884, %v896
    %v898 = vpop.f32.mrf.mxu0
    %899 = vdwg.mxu0
    %900 = vmatpush.bf16.msra.mxu0 %v721
    %901 = vmatpush.bf16.msra.mxu0 %v718
    %902 = vmatpush.bf16.msra.mxu0 %v715
    %903 = vmatpush.bf16.msra.mxu0 %v712
    %904 = vmatpush.bf16.msra.mxu0 %v709
    %905 = vmatpush.bf16.msra.mxu0 %v706
    %906 = vmatpush.bf16.msra.mxu0 %v703
    %907 = vmatpush.bf16.msra.mxu0 %v700
    %908 = vmatmul.bf16.gmra.mxu0 %v100
    %v909 = vpop.f32.mrf.mxu0
    %v910 = vadd.f32 %v897, %v909
    %v911 = vpop.f32.mrf.mxu0
    %912 = vdwg.mxu0
    %913 = vmatpush.bf16.msra.mxu0 0
    %914 = vmatpush.bf16.msra.mxu0 0
    %915 = vmatpush.bf16.msra.mxu0 0
    %916 = vmatpush.bf16.msra.mxu0 %v853
    %917 = vmatpush.bf16.msra.mxu0 %v733
    %918 = vmatpush.bf16.msra.mxu0 %v730
    %919 = vmatpush.bf16.msra.mxu0 %v727
    %920 = vmatpush.bf16.msra.mxu0 %v724
    %921 = vmatmul.bf16.gmra.mxu0 %v849
    %v922 = vpop.f32.mrf.mxu0
    %v923 = vadd.f32 %v910, %v922
    %v924 = vpop.f32.mrf.mxu0
    %925 = vdwg.mxu0
    %926 = vmatpush.bf16.msra.mxu0 %v650
    %927 = vmatpush.bf16.msra.mxu0 %v647
    %928 = vmatpush.bf16.msra.mxu0 %v644
    %929 = vmatpush.bf16.msra.mxu0 %v641
    %930 = vmatpush.bf16.msra.mxu0 %v638
    %931 = vmatpush.bf16.msra.mxu0 %v635
    %932 = vmatpush.bf16.msra.mxu0 %v632
    %933 = vmatpush.bf16.msra.mxu0 %v629
    %934 = vmatmul.bf16.gmra.mxu0 %v97
    %v935 = vpop.f32.mrf.mxu0
    %v936 = vadd.f32 %v253, %v935
    %v937 = vpop.f32.mrf.mxu0
    %938 = vdwg.mxu0
    %939 = vmatpush.bf16.msra.mxu0 %v674
    %940 = vmatpush.bf16.msra.mxu0 %v671
    %941 = vmatpush.bf16.msra.mxu0 %v668
    %942 = vmatpush.bf16.msra.mxu0 %v665
    %943 = vmatpush.bf16.msra.mxu0 %v662
    %944 = vmatpush.bf16.msra.mxu0 %v659
    %945 = vmatpush.bf16.msra.mxu0 %v656
    %946 = vmatpush.bf16.msra.mxu0 %v653
    %947 = vmatmul.bf16.gmra.mxu0 %v98
    %v948 = vpop.f32.mrf.mxu0
    %v949 = vadd.f32 %v936, %v948
    %v950 = vpop.f32.mrf.mxu0
    %951 = vdwg.mxu0
    %952 = vmatpush.bf16.msra.mxu0 %v698
    %953 = vmatpush.bf16.msra.mxu0 %v695
    %954 = vmatpush.bf16.msra.mxu0 %v692
    %955 = vmatpush.bf16.msra.mxu0 %v689
    %956 = vmatpush.bf16.msra.mxu0 %v686
    %957 = vmatpush.bf16.msra.mxu0 %v683
    %958 = vmatpush.bf16.msra.mxu0 %v680
    %959 = vmatpush.bf16.msra.mxu0 %v677
    %960 = vmatmul.bf16.gmra.mxu0 %v99
    %v961 = vpop.f32.mrf.mxu0
    %v962 = vadd.f32 %v949, %v961
    %v963 = vpop.f32.mrf.mxu0
    %964 = vdwg.mxu0
    %965 = vmatpush.bf16.msra.mxu0 %v722
    %966 = vmatpush.bf16.msra.mxu0 %v719
    %967 = vmatpush.bf16.msra.mxu0 %v716
    %968 = vmatpush.bf16.msra.mxu0 %v713
    %969 = vmatpush.bf16.msra.mxu0 %v710
    %970 = vmatpush.bf16.msra.mxu0 %v707
    %971 = vmatpush.bf16.msra.mxu0 %v704
    %972 = vmatpush.bf16.msra.mxu0 %v701
    %973 = vmatmul.bf16.gmra.mxu0 %v100
    %v974 = vpop.f32.mrf.mxu0
    %v975 = vadd.f32 %v962, %v974
    %v976 = vpop.f32.mrf.mxu0
    %977 = vdwg.mxu0
    %978 = vmatpush.bf16.msra.mxu0 0
    %979 = vmatpush.bf16.msra.mxu0 0
    %980 = vmatpush.bf16.msra.mxu0 0
    %981 = vmatpush.bf16.msra.mxu0 %v856
    %982 = vmatpush.bf16.msra.mxu0 %v734
    %983 = vmatpush.bf16.msra.mxu0 %v731
    %984 = vmatpush.bf16.msra.mxu0 %v728
    %985 = vmatpush.bf16.msra.mxu0 %v725
    %986 = vmatmul.bf16.gmra.mxu0 %v849
    %v987 = vpop.f32.mrf.mxu0
    %v988 = vadd.f32 %v975, %v987
    %v989 = vpop.f32.mrf.mxu0
    %990 = vdwg.mxu0
    %991 = vmatpush.bf16.msra.mxu0 %v651
    %992 = vmatpush.bf16.msra.mxu0 %v648
    %993 = vmatpush.bf16.msra.mxu0 %v645
    %994 = vmatpush.bf16.msra.mxu0 %v642
    %995 = vmatpush.bf16.msra.mxu0 %v639
    %996 = vmatpush.bf16.msra.mxu0 %v636
    %997 = vmatpush.bf16.msra.mxu0 %v633
    %998 = vmatpush.bf16.msra.mxu0 %v630
    %999 = vmatmul.bf16.gmra.mxu0 %v97
    %v1000 = vpop.f32.mrf.mxu0
    %v1001 = vadd.f32 %v254, %v1000
    %v1002 = vpop.f32.mrf.mxu0
    %1003 = vdwg.mxu0
    %1004 = vmatpush.bf16.msra.mxu0 %v675
    %1005 = vmatpush.bf16.msra.mxu0 %v672
    %1006 = vmatpush.bf16.msra.mxu0 %v669
    %1007 = vmatpush.bf16.msra.mxu0 %v666
    %1008 = vmatpush.bf16.msra.mxu0 %v663
    %1009 = vmatpush.bf16.msra.mxu0 %v660
    %1010 = vmatpush.bf16.msra.mxu0 %v657
    %1011 = vmatpush.bf16.msra.mxu0 %v654
    %1012 = vmatmul.bf16.gmra.mxu0 %v98
    %v1013 = vpop.f32.mrf.mxu0
    %v1014 = vadd.f32 %v1001, %v1013
    %v1015 = vpop.f32.mrf.mxu0
    %1016 = vdwg.mxu0
    %1017 = vmatpush.bf16.msra.mxu0 %v699
    %1018 = vmatpush.bf16.msra.mxu0 %v696
    %1019 = vmatpush.bf16.msra.mxu0 %v693
    %1020 = vmatpush.bf16.msra.mxu0 %v690
    %1021 = vmatpush.bf16.msra.mxu0 %v687
    %1022 = vmatpush.bf16.msra.mxu0 %v684
    %1023 = vmatpush.bf16.msra.mxu0 %v681
    %1024 = vmatpush.bf16.msra.mxu0 %v678
    %1025 = vmatmul.bf16.gmra.mxu0 %v99
    %v1026 = vpop.f32.mrf.mxu0
    %v1027 = vadd.f32 %v1014, %v1026
    %v1028 = vpop.f32.mrf.mxu0
    %1029 = vdwg.mxu0
    %1030 = vmatpush.bf16.msra.mxu0 %v723
    %1031 = vmatpush.bf16.msra.mxu0 %v720
    %1032 = vmatpush.bf16.msra.mxu0 %v717
    %1033 = vmatpush.bf16.msra.mxu0 %v714
    %1034 = vmatpush.bf16.msra.mxu0 %v711
    %1035 = vmatpush.bf16.msra.mxu0 %v708
    %1036 = vmatpush.bf16.msra.mxu0 %v705
    %1037 = vmatpush.bf16.msra.mxu0 %v702
    %1038 = vmatmul.bf16.gmra.mxu0 %v100
    %v1039 = vpop.f32.mrf.mxu0
    %v1040 = vadd.f32 %v1027, %v1039
    %v1041 = vpop.f32.mrf.mxu0
    %1042 = vdwg.mxu0
    %1043 = vmatpush.bf16.msra.mxu0 0
    %1044 = vmatpush.bf16.msra.mxu0 0
    %1045 = vmatpush.bf16.msra.mxu0 0
    %1046 = vmatpush.bf16.msra.mxu0 %v859
    %1047 = vmatpush.bf16.msra.mxu0 %v735
    %1048 = vmatpush.bf16.msra.mxu0 %v732
    %1049 = vmatpush.bf16.msra.mxu0 %v729
    %1050 = vmatpush.bf16.msra.mxu0 %v726
    %1051 = vmatmul.bf16.gmra.mxu0 %v849
    %v1052 = vpop.f32.mrf.mxu0
    %v1053 = vadd.f32 %v1040, %v1052
    %v1054 = vpop.f32.mrf.mxu0
    %1055 = vdwg.mxu0
    %v1056 = vld [vmem:[#allocation8] sm:$0x7]
    %v1057 = vld [vmem:[#allocation10] ss:$8 sm:$0x7]
    %v1058 = vadd.f32 %v1056, %v1057
    %v1059 = vld [vmem:[#allocation10] sm:$0x1e]
    %v1060 = vld [vmem:[#allocation10 + $0x8] sm:$0x1e]
    %v1061 = vld [vmem:[#allocation10 + $0x10] sm:$0x1e]
    %v1065 = vrot.slane %v1059, 1
    %v1066 = vrot.slane %v1060, 1
    %v1067 = vrot.slane %v1061, 1
    %v1071 = vadd.f32 %v923, %v1065
    %v1072 = vadd.f32 %v988, %v1066
    %v1073 = vadd.f32 %v1053, %v1067
    %v1074 = vrot.slane %v1059, 5
    %v1075 = vrot.slane %v1060, 5
    %v1076 = vrot.slane %v1061, 5
    %v1080 = vadd.f32 %v923, %v1074
    %v1081 = vadd.f32 %v988, %v1075
    %v1082 = vadd.f32 %v1053, %v1076
    %v1084 = vperm.slane %v1058, 0
    %v1085 = vperm.slane %v1058, 1
    %v1086 = vperm.slane %v1058, 2
    %v1093 = vrot.slane %v1071, 7
    %v1094 = vrot.slane %v1072, 7
    %v1095 = vrot.slane %v1073, 7
    %v1102 = vrot.slane %v1080, 3
    %v1103 = vrot.slane %v1081, 3
    %v1104 = vrot.slane %v1082, 3
    %vm1108 = vcmask 1040384
    %v1109 = vsel %vm1108, %v1084, %v1093
    %v1110 = vsel %vm1108, %v1085, %v1094
    %v1111 = vsel %vm1108, %v1086, %v1095
    %vm1112 = vcmask 1044480
    %v1113 = vsel %vm1112, %v1109, 0.0
    %v1114 = vsel %vm1112, %v1110, 0.0
    %v1115 = vsel %vm1112, %v1111, 0.0
    %v1116 = vsel %vm1108, %v1084, %v1102
    %v1117 = vsel %vm1108, %v1085, %v1103
    %v1118 = vsel %vm1108, %v1086, %v1104
    %v1119 = vsel %vm1112, %v1116, 0.0
    %v1120 = vsel %vm1112, %v1117, 0.0
    %v1121 = vsel %vm1112, %v1118, 0.0
    %1122 = vst [vmem:[#allocation11] sm:$0xff] %v1113
    %1123 = vst [vmem:[#allocation11 + $0x8] sm:$0xff] %v1114
    %1124 = vst [vmem:[#allocation11 + $0x10] sm:$0xff] %v1115
    %1125 = vst [vmem:[#allocation11 + $0x18] sm:$0xff] %v1119
    %1126 = vst [vmem:[#allocation11 + $0x20] sm:$0xff] %v1120
    %1127 = vst [vmem:[#allocation11 + $0x28] sm:$0xff] %v1121
    // Predicated region
    $region42: #{tpu_custom_call.1} parent=1 // pred_check
      _
    $region43: #{tpu_custom_call.1} parent=1 // pred_check_branch
      %1129 = sbr.rel (0) target = $region45
    $region44: #{tpu_custom_call.1} parent=1 // pred_region
      %1131 = vsyncadd [#allocation4], 0
      %s1132 = sshll.u32 [#allocation11], 4
      %s1133 = int_to_ptr.vmem [resolvable:$true] %s1132
      %s1134 = sshll.u32 %s5, 4
      %s1135 = int_to_ptr.hbm [resolvable:$true] %s1134
      %1140 = dma.vmem_to_hbm [thread:$0]  %s1133, 768, %s1135, [#allocation4], 384, 384, 24
    $region45: #{tpu_custom_call.1} parent=1 // pred_fallthru
      _
    // Predicated region
    $region46: #{tpu_custom_call.1} parent=1 // pred_check
      _
    $region47: #{tpu_custom_call.1} parent=1 // pred_check_branch
      %1142 = sbr.rel (0) target = $region49
    $region48: #{tpu_custom_call.1} parent=1 // pred_region
      %1144 = dma.done [#allocation4], 768
    $region49: #{tpu_custom_call.1} parent=1 // pred_fallthru
      _
    %1145 = vsyncpa [#allocation3], 1
    %1146 = vsyncpa [#allocation6], 1
    %1147 = vsyncpa [#allocation9], 1
    %1148 = vsyncpa [#allocation4], 1

</llo_original>
